<compile_context>
chip_gen: v7x
topology: tpu7x:2x2x1
jax: 0.10.0
libtpu: 0.0.40
codegen_flags: <defaults>
</compile_context>

<pallas_src>
import functools

import jax
import jax.numpy as jnp
import numpy as np
from jax.experimental import pallas as pl
from jax.experimental.pallas import tpu as pltpu

_HALF_LOG_2PI = float(0.5 * np.log(2.0 * np.pi))
_LOG2 = float(np.log(2.0))
# per-element constant of (logN - tanh_correction): -(0.5*log(2*pi) + 2*log(2))
_LOGP_CONST = -(_HALF_LOG_2PI + 2.0 * _LOG2)


def _policy_kernel(obs_ref, noise_ref,
                   w1_ref, b1_ref, w2_ref, b2_ref,
                   wh_ref, bh_ref,
                   lim_ref, off_ref,
                   out_ref, *, act_dim):
    # obs streamed as bf16; weights bf16; MXU accumulates in f32; all
    # post-matmul elementwise math stays f32 (v5e-safe).
    x = obs_ref[...]

    # --- feature extractor: mlp([obs_dim, h1, h2], ReLU) ---
    h = jnp.dot(x, w1_ref[...], preferred_element_type=jnp.float32) + b1_ref[...]
    h = jnp.maximum(h, 0.0)
    h = jnp.dot(h.astype(jnp.bfloat16), w2_ref[...],
                preferred_element_type=jnp.float32) + b2_ref[...]
    h = jnp.maximum(h, 0.0)

    # --- fused mu / log_std heads: single (h2, 2*act_dim) matmul ---
    head = jnp.dot(h.astype(jnp.bfloat16), wh_ref[...],
                   preferred_element_type=jnp.float32) + bh_ref[...]
    mu = head[:, :act_dim]
    log_std = jnp.clip(head[:, act_dim:], -20.0, 2.0)
    std = jnp.exp(log_std)

    # --- reparameterised sample (rsample): a = mu + std * eps ---
    eps = noise_ref[...]
    action = mu + std * eps

    # --- squash & scale ---
    squashed = jnp.tanh(action)
    action_pi = lim_ref[...] * squashed + off_ref[...]

    # --- log-prob:  logN(a|mu,std) - 2*(log2 - a - softplus(-2a)) ---
    # per-element variable part = -0.5*eps^2 - log_std + 2*a + 2*softplus(-2a)
    # constants folded into _LOGP_CONST, added once after the reduction.
    z = -2.0 * action
    softplus_z = jnp.maximum(z, 0.0) + jnp.log1p(jnp.exp(-jnp.abs(z)))
    per_elem = -0.5 * eps * eps - log_std + 2.0 * action + 2.0 * softplus_z
    logp = (jnp.sum(per_elem, axis=-1, keepdims=True)
            + jnp.float32(act_dim * _LOGP_CONST))

    # --- one full-tile, lane-contiguous store (action | log_prob) ---
    out_ref[...] = jnp.concatenate([action_pi, logp], axis=-1)


def _cdiv(a, b):
    return -(-a // b)


def _round_up(x, m):
    return (x + m - 1) // m * m


def squashed_gaussian_policy(obs, noise, params, act_limit, act_offset,
                             *, block_rows=4096):
    """Run the fused policy kernel.

    obs:   (B, obs_dim) float32
    noise: (B, act_dim) float32 standard normal (zeros => deterministic path)
    Returns (action_pi (B, act_dim), log_prob (B,)).
    """
    B, obs_dim = obs.shape
    act_dim = act_limit.shape[-1]
    h1 = params["w1"].shape[1]
    h2 = params["w2"].shape[1]

    # Pack heads (mu | log_std) together; weights bf16, biases f32.
    w1 = params["w1"].astype(jnp.bfloat16)
    w2 = params["w2"].astype(jnp.bfloat16)
    wh = jnp.concatenate([params["wmu"], params["wls"]],
                         axis=1).astype(jnp.bfloat16)
    b1 = params["b1"].reshape(1, h1).astype(jnp.float32)
    b2 = params["b2"].reshape(1, h2).astype(jnp.float32)
    bh = jnp.concatenate([params["bmu"].reshape(1, act_dim),
                          params["bls"].reshape(1, act_dim)],
                         axis=1).astype(jnp.float32)
    lim = act_limit.reshape(1, act_dim).astype(jnp.float32)
    off = act_offset.reshape(1, act_dim).astype(jnp.float32)

    # Balanced batch tiling: pick the block count first, then a 16-aligned
    # tile that minimises padding.  For B >= 64 force an even block count so
    # the "parallel" axis shards evenly across v7x's two TensorCores.
    n_blocks = _cdiv(B, block_rows)
    if B >= 64:
        n_blocks = max(2, n_blocks)
        n_blocks += n_blocks % 2
    tb = _round_up(_cdiv(B, n_blocks), 16)
    b_pad = tb * n_blocks
    if b_pad != B:
        pad = b_pad - B
        obs = jnp.pad(obs, ((0, pad), (0, 0)))
        noise = jnp.pad(noise, ((0, pad), (0, 0)))

    # Stream obs as bf16 (half the HBM bytes of the dominant input stream).
    obs_bf16 = obs.astype(jnp.bfloat16)
    noise = noise.astype(jnp.float32)

    def row_spec(d):                       # streamed per-batch-block operands
        return pl.BlockSpec((tb, d), lambda i: (i, 0))

    def const_spec(r, c):                  # VMEM-resident weights / constants
        return pl.BlockSpec((r, c), lambda i: (0, 0))

    in_specs = [
        row_spec(obs_dim),            # obs (bf16, streamed)
        row_spec(act_dim),            # noise (f32, streamed)
        const_spec(obs_dim, h1),      # w1
        const_spec(1, h1),            # b1
        const_spec(h1, h2),           # w2
        const_spec(1, h2),            # b2
        const_spec(h2, 2 * act_dim),  # w_head (mu | log_std)
        const_spec(1, 2 * act_dim),   # b_head
        const_spec(1, act_dim),       # act_limit
        const_spec(1, act_dim),       # act_offset
    ]
    out_spec = pl.BlockSpec((tb, act_dim + 1), lambda i: (i, 0))

    flops = 2 * b_pad * (obs_dim * h1 + h1 * h2 + h2 * 2 * act_dim)
    transcendentals = 4 * b_pad * act_dim           # exp, tanh, exp, log1p
    bytes_accessed = (2 * b_pad * obs_dim           # obs bf16
                      + 4 * b_pad * act_dim         # noise f32
                      + 4 * b_pad * (act_dim + 1)   # output slab f32
                      + 2 * (obs_dim * h1 + h1 * h2 + 2 * h2 * act_dim)  # bf16 W
                      + 4 * (h1 + h2 + 4 * act_dim))                     # biases etc.

    out = pl.pallas_call(
        functools.partial(_policy_kernel, act_dim=act_dim),
        grid=(n_blocks,),
        in_specs=in_specs,
        out_specs=out_spec,
        out_shape=jax.ShapeDtypeStruct((b_pad, act_dim + 1), jnp.float32),
        compiler_params=pltpu.CompilerParams(
            dimension_semantics=("parallel",)),      # shards across v7x's 2 TCs
        cost_estimate=pl.CostEstimate(flops=flops,
                                      transcendentals=transcendentals,
                                      bytes_accessed=bytes_accessed),
    )(obs_bf16, noise, w1, b1, w2, b2, wh, bh, lim, off)

    action_pi = out[:B, :act_dim]
    log_prob = out[:B, act_dim]
    return action_pi, log_prob


def _reference(obs, noise, params, act_limit, act_offset):
    """Pure-JAX f32 reference of SquashedGaussianPolicy.forward (rsample path)."""
    h = jnp.maximum(obs @ params["w1"] + params["b1"], 0.0)
    h = jnp.maximum(h @ params["w2"] + params["b2"], 0.0)
    mu = h @ params["wmu"] + params["bmu"]
    log_std = jnp.clip(h @ params["wls"] + params["bls"], -20.0, 2.0)
    std = jnp.exp(log_std)
    action = mu + std * noise
    action_pi = act_limit * jnp.tanh(action) + act_offset
    normal_lp = -0.5 * ((action - mu) / std) ** 2 - log_std - _HALF_LOG_2PI
    corr = 2.0 * (_LOG2 - action - jax.nn.softplus(-2.0 * action))
    log_prob = jnp.sum(normal_lp - corr, axis=-1)
    return action_pi, log_prob


def init_params(key, obs_dim, hidden_sizes, act_dim):
    """Deterministic synthetic init (Linear weights stored as (in, out))."""
    h1, h2 = hidden_sizes
    keys = jax.random.split(key, 8)

    def lin(kw, kb, din, dout):
        bound = 1.0 / np.sqrt(din)
        w = jax.random.uniform(kw, (din, dout), jnp.float32, -bound, bound)
        b = jax.random.uniform(kb, (1, dout), jnp.float32, -bound, bound)
        return w, b

    w1, b1 = lin(keys[0], keys[1], obs_dim, h1)
    w2, b2 = lin(keys[2], keys[3], h1, h2)
    wmu, bmu = lin(keys[4], keys[5], h2, act_dim)
    wls, bls = lin(keys[6], keys[7], h2, act_dim)
    return dict(w1=w1, b1=b1, w2=w2, b2=b2, wmu=wmu, bmu=bmu, wls=wls, bls=bls)


if __name__ == "__main__":
    B, OBS_DIM, ACT_DIM = 8, 16, 8
    HIDDEN = (32, 32)

    key = jax.random.PRNGKey(0)
    k_param, k_obs, k_noise = jax.random.split(key, 3)

    params = init_params(k_param, OBS_DIM, HIDDEN, ACT_DIM)
    obs = jax.random.normal(k_obs, (B, OBS_DIM), jnp.float32)
    noise = jax.random.normal(k_noise, (B, ACT_DIM), jnp.float32)  # eps for rsample()
    act_limit = jnp.full((ACT_DIM,), 2.0, jnp.float32)
    act_offset = jnp.full((ACT_DIM,), 0.5, jnp.float32)

    # stochastic forward (deterministic=False, with_logprob=True)
    action_pi, log_prob = jax.block_until_ready(
        squashed_gaussian_policy(obs, noise, params, act_limit, act_offset)
    )

    # deterministic forward == zero noise (action = mu); log_prob ignored.
    action_det, _ = jax.block_until_ready(
        squashed_gaussian_policy(obs, jnp.zeros_like(noise), params,
                                 act_limit, act_offset)
    )

    # pure-JAX f32 reference (kernel uses bf16 weights/activations on the MXU,
    # so tolerances are loose by design).
    ref_action, ref_logp = _reference(obs, noise, params, act_limit, act_offset)

    assert action_pi.shape == (B, ACT_DIM)
    assert log_prob.shape == (B,)
    assert action_det.shape == (B, ACT_DIM)
    assert bool(jnp.all(jnp.isfinite(action_pi)))
    assert bool(jnp.all(jnp.isfinite(log_prob)))
    assert bool(jnp.all(jnp.abs(action_det - 0.5) <= 2.0 + 1e-5))  # within act range
    assert float(jnp.max(jnp.abs(action_pi - ref_action))) < 0.1
    assert float(jnp.max(jnp.abs(log_prob - ref_logp))) < 1.0
    print("KERNEL_OK")
</pallas_src>

<mosaic_0001>
module attributes {stable_mosaic.version = 11 : i64} {
  func.func @_policy_kernel(%arg0: i32, %arg1: memref<16x16xbf16, #tpu.memory_space<vmem>>, %arg2: memref<16x8xf32, #tpu.memory_space<vmem>>, %arg3: memref<16x32xbf16, #tpu.memory_space<vmem>>, %arg4: memref<1x32xf32, #tpu.memory_space<vmem>>, %arg5: memref<32x32xbf16, #tpu.memory_space<vmem>>, %arg6: memref<1x32xf32, #tpu.memory_space<vmem>>, %arg7: memref<32x16xbf16, #tpu.memory_space<vmem>>, %arg8: memref<1x16xf32, #tpu.memory_space<vmem>>, %arg9: memref<1x8xf32, #tpu.memory_space<vmem>>, %arg10: memref<1x8xf32, #tpu.memory_space<vmem>>, %arg11: memref<16x9xf32, #tpu.memory_space<vmem>>) attributes {dimension_semantics = [#tpu.dimension_semantics<parallel>], iteration_bounds = array<i64: 1>, scalar_prefetch = 0 : i64, scratch_operands = 0 : i64, tpu.core_type = #tpu.core_type<tc>, window_params = [{transform_indices = @transform_0, window_bounds = array<i64: 16, 16>}, {transform_indices = @transform_1, window_bounds = array<i64: 16, 8>}, {pipeline_mode = #tpu.pipeline_mode<synchronous>, transform_indices = @transform_2, window_bounds = array<i64: 16, 32>}, {pipeline_mode = #tpu.pipeline_mode<synchronous>, transform_indices = @transform_3, window_bounds = array<i64: 1, 32>}, {pipeline_mode = #tpu.pipeline_mode<synchronous>, transform_indices = @transform_4, window_bounds = array<i64: 32, 32>}, {pipeline_mode = #tpu.pipeline_mode<synchronous>, transform_indices = @transform_5, window_bounds = array<i64: 1, 32>}, {pipeline_mode = #tpu.pipeline_mode<synchronous>, transform_indices = @transform_6, window_bounds = array<i64: 32, 16>}, {pipeline_mode = #tpu.pipeline_mode<synchronous>, transform_indices = @transform_7, window_bounds = array<i64: 1, 16>}, {pipeline_mode = #tpu.pipeline_mode<synchronous>, transform_indices = @transform_8, window_bounds = array<i64: 1, 8>}, {pipeline_mode = #tpu.pipeline_mode<synchronous>, transform_indices = @transform_9, window_bounds = array<i64: 1, 8>}, {transform_indices = @transform_10, window_bounds = array<i64: 16, 9>}]} {
    %c0 = arith.constant 0 : index
    %c0_0 = arith.constant 0 : index
    %0 = vector.load %arg1[%c0, %c0_0] : memref<16x16xbf16, #tpu.memory_space<vmem>>, vector<16x16xbf16>
    %c0_1 = arith.constant 0 : index
    %c0_2 = arith.constant 0 : index
    %1 = vector.load %arg3[%c0_1, %c0_2] : memref<16x32xbf16, #tpu.memory_space<vmem>>, vector<16x32xbf16>
    %cst = arith.constant dense<0.000000e+00> : vector<16x32xf32>
    %2 = tpu.matmul %0, %1, %cst {dimension_numbers = #tpu.dot_dimension_numbers<[1], [0], [0], [1], [0, 0, 1, 1], [], []>} : vector<16x16xbf16>, vector<16x32xbf16>, vector<16x32xf32> -> vector<16x32xf32>
    %c0_3 = arith.constant 0 : index
    %c0_4 = arith.constant 0 : index
    %3 = vector.load %arg4[%c0_3, %c0_4] : memref<1x32xf32, #tpu.memory_space<vmem>>, vector<1x32xf32>
    %4 = vector.broadcast %3 : vector<1x32xf32> to vector<16x32xf32>
    %5 = arith.addf %2, %4 : vector<16x32xf32>
    %cst_5 = arith.constant 0.000000e+00 : f32
    %6 = vector.broadcast %cst_5 : f32 to vector<16x32xf32>
    %7 = arith.maximumf %5, %6 : vector<16x32xf32>
    %8 = arith.truncf %7 : vector<16x32xf32> to vector<16x32xbf16>
    %c0_6 = arith.constant 0 : index
    %c0_7 = arith.constant 0 : index
    %9 = vector.load %arg5[%c0_6, %c0_7] : memref<32x32xbf16, #tpu.memory_space<vmem>>, vector<32x32xbf16>
    %cst_8 = arith.constant dense<0.000000e+00> : vector<16x32xf32>
    %10 = tpu.matmul %8, %9, %cst_8 {dimension_numbers = #tpu.dot_dimension_numbers<[1], [0], [0], [1], [0, 0, 1, 1], [], []>} : vector<16x32xbf16>, vector<32x32xbf16>, vector<16x32xf32> -> vector<16x32xf32>
    %c0_9 = arith.constant 0 : index
    %c0_10 = arith.constant 0 : index
    %11 = vector.load %arg6[%c0_9, %c0_10] : memref<1x32xf32, #tpu.memory_space<vmem>>, vector<1x32xf32>
    %12 = vector.broadcast %11 : vector<1x32xf32> to vector<16x32xf32>
    %13 = arith.addf %10, %12 : vector<16x32xf32>
    %cst_11 = arith.constant 0.000000e+00 : f32
    %14 = vector.broadcast %cst_11 : f32 to vector<16x32xf32>
    %15 = arith.maximumf %13, %14 : vector<16x32xf32>
    %16 = arith.truncf %15 : vector<16x32xf32> to vector<16x32xbf16>
    %c0_12 = arith.constant 0 : index
    %c0_13 = arith.constant 0 : index
    %17 = vector.load %arg7[%c0_12, %c0_13] : memref<32x16xbf16, #tpu.memory_space<vmem>>, vector<32x16xbf16>
    %cst_14 = arith.constant dense<0.000000e+00> : vector<16x16xf32>
    %18 = tpu.matmul %16, %17, %cst_14 {dimension_numbers = #tpu.dot_dimension_numbers<[1], [0], [0], [1], [0, 0, 1, 1], [], []>} : vector<16x32xbf16>, vector<32x16xbf16>, vector<16x16xf32> -> vector<16x16xf32>
    %c0_15 = arith.constant 0 : index
    %c0_16 = arith.constant 0 : index
    %19 = vector.load %arg8[%c0_15, %c0_16] : memref<1x16xf32, #tpu.memory_space<vmem>>, vector<1x16xf32>
    %20 = vector.broadcast %19 : vector<1x16xf32> to vector<16x16xf32>
    %21 = arith.addf %18, %20 : vector<16x16xf32>
    %22 = vector.extract_strided_slice %21 {offsets = [0, 0], sizes = [16, 8], strides = [1, 1]} : vector<16x16xf32> to vector<16x8xf32>
    %23 = vector.extract_strided_slice %21 {offsets = [0, 8], sizes = [16, 8], strides = [1, 1]} : vector<16x16xf32> to vector<16x8xf32>
    %cst_17 = arith.constant -2.000000e+01 : f32
    %cst_18 = arith.constant 2.000000e+00 : f32
    %24 = vector.broadcast %cst_17 : f32 to vector<16x8xf32>
    %25 = arith.maximumf %24, %23 : vector<16x8xf32>
    %26 = vector.broadcast %cst_18 : f32 to vector<16x8xf32>
    %27 = arith.minimumf %26, %25 : vector<16x8xf32>
    %28 = math.exp %27 : vector<16x8xf32>
    %c0_19 = arith.constant 0 : index
    %c0_20 = arith.constant 0 : index
    %29 = vector.load %arg2[%c0_19, %c0_20] : memref<16x8xf32, #tpu.memory_space<vmem>>, vector<16x8xf32>
    %30 = arith.mulf %28, %29 : vector<16x8xf32>
    %31 = arith.addf %22, %30 : vector<16x8xf32>
    %32 = math.tanh %31 : vector<16x8xf32>
    %c0_21 = arith.constant 0 : index
    %c0_22 = arith.constant 0 : index
    %33 = vector.load %arg9[%c0_21, %c0_22] : memref<1x8xf32, #tpu.memory_space<vmem>>, vector<1x8xf32>
    %34 = vector.broadcast %33 : vector<1x8xf32> to vector<16x8xf32>
    %35 = arith.mulf %34, %32 : vector<16x8xf32>
    %c0_23 = arith.constant 0 : index
    %c0_24 = arith.constant 0 : index
    %36 = vector.load %arg10[%c0_23, %c0_24] : memref<1x8xf32, #tpu.memory_space<vmem>>, vector<1x8xf32>
    %37 = vector.broadcast %36 : vector<1x8xf32> to vector<16x8xf32>
    %38 = arith.addf %35, %37 : vector<16x8xf32>
    %cst_25 = arith.constant -2.000000e+00 : f32
    %39 = vector.broadcast %cst_25 : f32 to vector<16x8xf32>
    %40 = arith.mulf %39, %31 : vector<16x8xf32>
    %cst_26 = arith.constant 0.000000e+00 : f32
    %41 = vector.broadcast %cst_26 : f32 to vector<16x8xf32>
    %42 = arith.maximumf %40, %41 : vector<16x8xf32>
    %43 = math.absf %40 : vector<16x8xf32>
    %cst_27 = arith.constant 0.000000e+00 : f32
    %44 = vector.broadcast %cst_27 : f32 to vector<16x8xf32>
    %45 = arith.subf %44, %43 : vector<16x8xf32>
    %46 = math.exp %45 : vector<16x8xf32>
    %47 = math.log1p %46 : vector<16x8xf32>
    %48 = arith.addf %42, %47 : vector<16x8xf32>
    %cst_28 = arith.constant -5.000000e-01 : f32
    %49 = vector.broadcast %cst_28 : f32 to vector<16x8xf32>
    %50 = arith.mulf %49, %29 : vector<16x8xf32>
    %51 = arith.mulf %50, %29 : vector<16x8xf32>
    %52 = arith.subf %51, %27 : vector<16x8xf32>
    %cst_29 = arith.constant 2.000000e+00 : f32
    %53 = vector.broadcast %cst_29 : f32 to vector<16x8xf32>
    %54 = arith.mulf %53, %31 : vector<16x8xf32>
    %55 = arith.addf %52, %54 : vector<16x8xf32>
    %cst_30 = arith.constant 2.000000e+00 : f32
    %56 = vector.broadcast %cst_30 : f32 to vector<16x8xf32>
    %57 = arith.mulf %56, %48 : vector<16x8xf32>
    %58 = arith.addf %55, %57 : vector<16x8xf32>
    %cst_31 = arith.constant dense<0.000000e+00> : vector<16xf32>
    %59 = vector.multi_reduction <add>, %58, %cst_31 [1] : vector<16x8xf32> to vector<16xf32>
    %60 = vector.shape_cast %59 : vector<16xf32> to vector<16x1xf32>
    %cst_32 = arith.constant -18.441864 : f32
    %61 = vector.broadcast %cst_32 : f32 to vector<16x1xf32>
    %62 = arith.addf %60, %61 : vector<16x1xf32>
    %63 = tpu.concatenate %38, %62 in 1 : vector<16x8xf32>, vector<16x1xf32> -> vector<16x9xf32>
    %c0_33 = arith.constant 0 : index
    %c0_34 = arith.constant 0 : index
    %64 = vector.load %arg11[%c0_33, %c0_34] : memref<16x9xf32, #tpu.memory_space<vmem>>, vector<16x9xf32>
    tpu.vector_store %arg11[%c0_33, %c0_34], %63 {strides = array<i32>} : memref<16x9xf32, #tpu.memory_space<vmem>>, vector<16x9xf32>,
    return
  }
  func.func @transform_0(%arg0: i32) -> (i32, i32) {
    %c0_i32 = arith.constant 0 : i32
    %c0_i32_0 = arith.constant 0 : i32
    return %arg0, %c0_i32 : i32, i32
  }
  func.func @transform_1(%arg0: i32) -> (i32, i32) {
    %c0_i32 = arith.constant 0 : i32
    %c0_i32_0 = arith.constant 0 : i32
    return %arg0, %c0_i32 : i32, i32
  }
  func.func @transform_2(%arg0: i32) -> (i32, i32) {
    %c0_i32 = arith.constant 0 : i32
    %c0_i32_0 = arith.constant 0 : i32
    %c0_i32_1 = arith.constant 0 : i32
    return %c0_i32, %c0_i32_0 : i32, i32
  }
  func.func @transform_3(%arg0: i32) -> (i32, i32) {
    %c0_i32 = arith.constant 0 : i32
    %c0_i32_0 = arith.constant 0 : i32
    %c0_i32_1 = arith.constant 0 : i32
    return %c0_i32, %c0_i32_0 : i32, i32
  }
  func.func @transform_4(%arg0: i32) -> (i32, i32) {
    %c0_i32 = arith.constant 0 : i32
    %c0_i32_0 = arith.constant 0 : i32
    %c0_i32_1 = arith.constant 0 : i32
    return %c0_i32, %c0_i32_0 : i32, i32
  }
  func.func @transform_5(%arg0: i32) -> (i32, i32) {
    %c0_i32 = arith.constant 0 : i32
    %c0_i32_0 = arith.constant 0 : i32
    %c0_i32_1 = arith.constant 0 : i32
    return %c0_i32, %c0_i32_0 : i32, i32
  }
  func.func @transform_6(%arg0: i32) -> (i32, i32) {
    %c0_i32 = arith.constant 0 : i32
    %c0_i32_0 = arith.constant 0 : i32
    %c0_i32_1 = arith.constant 0 : i32
    return %c0_i32, %c0_i32_0 : i32, i32
  }
  func.func @transform_7(%arg0: i32) -> (i32, i32) {
    %c0_i32 = arith.constant 0 : i32
    %c0_i32_0 = arith.constant 0 : i32
    %c0_i32_1 = arith.constant 0 : i32
    return %c0_i32, %c0_i32_0 : i32, i32
  }
  func.func @transform_8(%arg0: i32) -> (i32, i32) {
    %c0_i32 = arith.constant 0 : i32
    %c0_i32_0 = arith.constant 0 : i32
    %c0_i32_1 = arith.constant 0 : i32
    return %c0_i32, %c0_i32_0 : i32, i32
  }
  func.func @transform_9(%arg0: i32) -> (i32, i32) {
    %c0_i32 = arith.constant 0 : i32
    %c0_i32_0 = arith.constant 0 : i32
    %c0_i32_1 = arith.constant 0 : i32
    return %c0_i32, %c0_i32_0 : i32, i32
  }
  func.func @transform_10(%arg0: i32) -> (i32, i32) {
    %c0_i32 = arith.constant 0 : i32
    %c0_i32_0 = arith.constant 0 : i32
    return %arg0, %c0_i32 : i32, i32
  }
}

</mosaic_0001>

<llo_original>
// kernel: tpu_custom_call.1
$region0: #{tpu_custom_call.1}
  #allocation0 [shape = 'u32[]', space=smem, size = 0x4, offset = 0x4, fixed_abs, tag = 'smem constant byte address 0x4 - core index']
  #allocation1 [shape = 'u32[144,128]{1,0:T(1,128)}', space=vmem, size = 0x12000, scoped, tag = 'internal scratch']
  %s0 = inlined_call_operand.vmem [shape: bf16[16,16], index: 0, kind: input, shape index: {}]
  %s1 = inlined_call_operand.vmem [shape: f32[16,8], index: 1, kind: input, shape index: {}]
  %s2 = inlined_call_operand.vmem [shape: bf16[16,32], index: 2, kind: input, shape index: {}]
  %s3 = inlined_call_operand.vmem [shape: f32[1,32], index: 3, kind: input, shape index: {}]
  %s4 = inlined_call_operand.vmem [shape: bf16[32,32], index: 4, kind: input, shape index: {}]
  %s5 = inlined_call_operand.vmem [shape: f32[1,32], index: 5, kind: input, shape index: {}]
  %s6 = inlined_call_operand.vmem [shape: bf16[32,16], index: 6, kind: input, shape index: {}]
  %s7 = inlined_call_operand.vmem [shape: f32[1,16], index: 7, kind: input, shape index: {}]
  %s8 = inlined_call_operand.vmem [shape: f32[1,8], index: 8, kind: input, shape index: {}]
  %s9 = inlined_call_operand.vmem [shape: f32[1,8], index: 9, kind: input, shape index: {}]
  %s10 = inlined_call_operand.hbm [shape: f32[16,9], index: 10, kind: output, shape index: {}]
  %s11 = sld [smem:[#allocation0]]
  $region50: #{tpu_custom_call.1} parent=0
    _
  %s13 = ssub.s32 1, %s11
  %s14 = scalar_select 0, %s13, %s11
  $region1: #{tpu_custom_call.1} parent=0
    #allocation2 [shape = 'u8[8192]{0}', space=vmem, size = 0x2000, scoped, tag = 'output window, operand 0, single buffered']
    #allocation3 [shape = 's32[1]{0}', space=sflag, size = 0x4, scoped, tag = 'scoped memory for tpu_custom_call.1']
    %15 = vsyncpa [#allocation3], 0
    // Predicated region
    $region2: #{tpu_custom_call.1} parent=1 // pred_check
      _
    $region3: #{tpu_custom_call.1} parent=1 // pred_check_branch
      %17 = sbr.rel (0) target = $region5
    $region4: #{tpu_custom_call.1} parent=1 // pred_region
      _
    $region5: #{tpu_custom_call.1} parent=1 // pred_fallthru
      _
    // Predicated region
    $region6: #{tpu_custom_call.1} parent=1 // pred_check
      _
    $region7: #{tpu_custom_call.1} parent=1 // pred_check_branch
      %19 = sbr.rel (0) target = $region9
    $region8: #{tpu_custom_call.1} parent=1 // pred_region
      _
    $region9: #{tpu_custom_call.1} parent=1 // pred_fallthru
      _
    // Predicated region
    $region10: #{tpu_custom_call.1} parent=1 // pred_check
      _
    $region11: #{tpu_custom_call.1} parent=1 // pred_check_branch
      %21 = sbr.rel (0) target = $region13
    $region12: #{tpu_custom_call.1} parent=1 // pred_region
      _
    $region13: #{tpu_custom_call.1} parent=1 // pred_fallthru
      _
    // Predicated region
    $region14: #{tpu_custom_call.1} parent=1 // pred_check
      _
    $region15: #{tpu_custom_call.1} parent=1 // pred_check_branch
      %23 = sbr.rel (0) target = $region17
    $region16: #{tpu_custom_call.1} parent=1 // pred_region
      _
    $region17: #{tpu_custom_call.1} parent=1 // pred_fallthru
      _
    // Predicated region
    $region18: #{tpu_custom_call.1} parent=1 // pred_check
      _
    $region19: #{tpu_custom_call.1} parent=1 // pred_check_branch
      %25 = sbr.rel (0) target = $region21
    $region20: #{tpu_custom_call.1} parent=1 // pred_region
      _
    $region21: #{tpu_custom_call.1} parent=1 // pred_fallthru
      _
    // Predicated region
    $region22: #{tpu_custom_call.1} parent=1 // pred_check
      _
    $region23: #{tpu_custom_call.1} parent=1 // pred_check_branch
      %27 = sbr.rel (0) target = $region25
    $region24: #{tpu_custom_call.1} parent=1 // pred_region
      _
    $region25: #{tpu_custom_call.1} parent=1 // pred_fallthru
      _
    // Predicated region
    $region26: #{tpu_custom_call.1} parent=1 // pred_check
      _
    $region27: #{tpu_custom_call.1} parent=1 // pred_check_branch
      %29 = sbr.rel (0) target = $region29
    $region28: #{tpu_custom_call.1} parent=1 // pred_region
      _
    $region29: #{tpu_custom_call.1} parent=1 // pred_fallthru
      _
    // Predicated region
    $region30: #{tpu_custom_call.1} parent=1 // pred_check
      _
    $region31: #{tpu_custom_call.1} parent=1 // pred_check_branch
      %31 = sbr.rel (0) target = $region33
    $region32: #{tpu_custom_call.1} parent=1 // pred_region
      _
    $region33: #{tpu_custom_call.1} parent=1 // pred_fallthru
      _
    // Predicated region
    $region34: #{tpu_custom_call.1} parent=1 // pred_check
      _
    $region35: #{tpu_custom_call.1} parent=1 // pred_check_branch
      %33 = sbr.rel (0) target = $region37
    $region36: #{tpu_custom_call.1} parent=1 // pred_region
      _
    $region37: #{tpu_custom_call.1} parent=1 // pred_fallthru
      _
    // Predicated region
    $region38: #{tpu_custom_call.1} parent=1 // pred_check
      _
    $region39: #{tpu_custom_call.1} parent=1 // pred_check_branch
      %35 = sbr.rel (0) target = $region41
    $region40: #{tpu_custom_call.1} parent=1 // pred_region
      _
    $region41: #{tpu_custom_call.1} parent=1 // pred_fallthru
      _
    %v37 = vld [vmem:[%s0] sm:$0xf]
    %v38 = vld [vmem:[%s0 + $0x4] sm:$0xf]
    %v39 = vld [vmem:[%s2] sm:$0xf]
    %v40 = vld [vmem:[%s2 + $0x4] sm:$0xf]
    %v41 = vld [vmem:[%s3] sm:$0x1]
    %v43 = vlaneseq
    %v44 = vshrl.u32 %v43, 7
    %v45 = vsub.s32 0, %v44
    %v46 = vrot.slane %v41, %v45
    %v50 = vunpack.c.l.b16 %v37
    %v51 = vunpack.c.l.b16 %v38
    %v52 = vpack.c.b16 %v51, %v50
    %v55 = vunpack.c.l.b16 %v39
    %v56 = vunpack.c.l.b16 %v40
    %v57 = vpack.c.b16 %v56, %v55
    %vm59 = vcmask 130048
    %v61 = vsel %vm59, %v52, 0
    %63 = vmatprep.subr.bf16.mxu0 0
    %64 = vmatpush1.bf16.msra.mxu0 %v57
    %65 = vmatprep.subr.bf16.mxu0 0
    %66 = vmatpush1.bf16.msra.mxu0 0
    %67 = vmatprep.subr.bf16.mxu0 0
    %68 = vmatpush1.bf16.msra.mxu0 0
    %69 = vmatprep.subr.bf16.mxu0 0
    %70 = vmatpush1.bf16.msra.mxu0 0
    %71 = vmatprep.subr.bf16.mxu0 0
    %72 = vmatpush1.bf16.msra.mxu0 0
    %73 = vmatprep.subr.bf16.mxu0 0
    %74 = vmatpush1.bf16.msra.mxu0 0
    %75 = vmatprep.subr.bf16.mxu0 0
    %76 = vmatpush1.bf16.msra.mxu0 0
    %77 = vmatprep.subr.bf16.mxu0 0
    %78 = vmatpush1.bf16.msra.mxu0 0
    %79 = vmatprep.subr.bf16.mxu0 0
    %80 = vmatpush1.bf16.msra.mxu0 0
    %81 = vmatprep.subr.bf16.mxu0 0
    %82 = vmatpush1.bf16.msra.mxu0 0
    %83 = vmatprep.subr.bf16.mxu0 0
    %84 = vmatpush1.bf16.msra.mxu0 0
    %85 = vmatprep.subr.bf16.mxu0 0
    %86 = vmatpush1.bf16.msra.mxu0 0
    %87 = vmatprep.subr.bf16.mxu0 0
    %88 = vmatpush1.bf16.msra.mxu0 0
    %89 = vmatprep.subr.bf16.mxu0 0
    %90 = vmatpush1.bf16.msra.mxu0 0
    %91 = vmatprep.subr.bf16.mxu0 0
    %92 = vmatpush1.bf16.msra.mxu0 0
    %93 = vmatprep.subr.bf16.mxu0 0
    %94 = vmatpush1.bf16.msra.mxu0 0
    %95 = vmatprep.mubr.bf16.mxu0 0
    %96 = vmatmul.mubr.bf16.gmra.mrb[0].mxu0 %v61
    %v97 = vpop.f32.mrb[0].mxu0
    %v98 = vadd.f32 %v46, %v97
    %v99 = vpop.f32.mrb[0].mxu0
    %v100 = vpop.f32.mrb[0].mxu0
    %v101 = vadd.f32 %v46, %v100
    %v102 = vpop.f32.mrb[0].mxu0
    %103 = vdwg.mxu0
    %v104 = vmax.f32 %v98, 0.0
    %v105 = vmax.f32 %v101, 0.0
    %v106 = vpack.c.bf16 %v105, %v104
    %v107 = vld [vmem:[%s4] sm:$0xf]
    %v108 = vld [vmem:[%s4 + $0x4] sm:$0xf]
    %v109 = vld [vmem:[%s4 + $0x8] sm:$0xf]
    %v110 = vld [vmem:[%s4 + $0xc] sm:$0xf]
    %v111 = vld [vmem:[%s5] sm:$0x1]
    %v113 = vlaneseq
    %v114 = vshrl.u32 %v113, 7
    %v115 = vsub.s32 0, %v114
    %v116 = vrot.slane %v111, %v115
    %v122 = vunpack.c.l.b16 %v107
    %v123 = vunpack.c.l.b16 %v108
    %v124 = vunpack.c.l.b16 %v109
    %v125 = vunpack.c.l.b16 %v110
    %v126 = vpack.c.b16 %v123, %v122
    %v127 = vpack.c.b16 %v125, %v124
    %vm130 = vcmask 261120
    %v132 = vsel %vm130, %v106, 0
    %134 = vmatprep.subr.bf16.mxu0 0
    %135 = vmatpush1.bf16.msra.mxu0 %v126
    %136 = vmatprep.subr.bf16.mxu0 0
    %137 = vmatpush1.bf16.msra.mxu0 %v127
    %138 = vmatprep.subr.bf16.mxu0 0
    %139 = vmatpush1.bf16.msra.mxu0 0
    %140 = vmatprep.subr.bf16.mxu0 0
    %141 = vmatpush1.bf16.msra.mxu0 0
    %142 = vmatprep.subr.bf16.mxu0 0
    %143 = vmatpush1.bf16.msra.mxu0 0
    %144 = vmatprep.subr.bf16.mxu0 0
    %145 = vmatpush1.bf16.msra.mxu0 0
    %146 = vmatprep.subr.bf16.mxu0 0
    %147 = vmatpush1.bf16.msra.mxu0 0
    %148 = vmatprep.subr.bf16.mxu0 0
    %149 = vmatpush1.bf16.msra.mxu0 0
    %150 = vmatprep.subr.bf16.mxu0 0
    %151 = vmatpush1.bf16.msra.mxu0 0
    %152 = vmatprep.subr.bf16.mxu0 0
    %153 = vmatpush1.bf16.msra.mxu0 0
    %154 = vmatprep.subr.bf16.mxu0 0
    %155 = vmatpush1.bf16.msra.mxu0 0
    %156 = vmatprep.subr.bf16.mxu0 0
    %157 = vmatpush1.bf16.msra.mxu0 0
    %158 = vmatprep.subr.bf16.mxu0 0
    %159 = vmatpush1.bf16.msra.mxu0 0
    %160 = vmatprep.subr.bf16.mxu0 0
    %161 = vmatpush1.bf16.msra.mxu0 0
    %162 = vmatprep.subr.bf16.mxu0 0
    %163 = vmatpush1.bf16.msra.mxu0 0
    %164 = vmatprep.subr.bf16.mxu0 0
    %165 = vmatpush1.bf16.msra.mxu0 0
    %166 = vmatprep.mubr.bf16.mxu0 0
    %167 = vmatmul.mubr.bf16.gmra.mrb[0].mxu0 %v132
    %v168 = vpop.f32.mrb[0].mxu0
    %v169 = vadd.f32 %v116, %v168
    %v170 = vpop.f32.mrb[0].mxu0
    %v171 = vpop.f32.mrb[0].mxu0
    %v172 = vadd.f32 %v116, %v171
    %v173 = vpop.f32.mrb[0].mxu0
    %174 = vdwg.mxu0
    %v175 = vmax.f32 %v169, 0.0
    %v176 = vmax.f32 %v172, 0.0
    %v177 = vpack.c.bf16 %v176, %v175
    %v178 = vld [vmem:[%s6] sm:$0xf]
    %v179 = vld [vmem:[%s6 + $0x4] sm:$0xf]
    %v180 = vld [vmem:[%s6 + $0x8] sm:$0xf]
    %v181 = vld [vmem:[%s6 + $0xc] sm:$0xf]
    %v182 = vld [vmem:[%s7] sm:$0x1]
    %v184 = vlaneseq
    %v185 = vshrl.u32 %v184, 7
    %v186 = vsub.s32 0, %v185
    %v187 = vrot.slane %v182, %v186
    %v193 = vunpack.c.l.b16 %v178
    %v194 = vunpack.c.l.b16 %v179
    %v195 = vunpack.c.l.b16 %v180
    %v196 = vunpack.c.l.b16 %v181
    %v197 = vpack.c.b16 %v194, %v193
    %v198 = vpack.c.b16 %v196, %v195
    %v202 = vsel %vm130, %v177, 0
    %204 = vmatprep.subr.bf16.mxu0 0
    %205 = vmatpush1.bf16.msra.mxu0 %v197
    %206 = vmatprep.subr.bf16.mxu0 0
    %207 = vmatpush1.bf16.msra.mxu0 %v198
    %208 = vmatprep.subr.bf16.mxu0 0
    %209 = vmatpush1.bf16.msra.mxu0 0
    %210 = vmatprep.subr.bf16.mxu0 0
    %211 = vmatpush1.bf16.msra.mxu0 0
    %212 = vmatprep.subr.bf16.mxu0 0
    %213 = vmatpush1.bf16.msra.mxu0 0
    %214 = vmatprep.subr.bf16.mxu0 0
    %215 = vmatpush1.bf16.msra.mxu0 0
    %216 = vmatprep.subr.bf16.mxu0 0
    %217 = vmatpush1.bf16.msra.mxu0 0
    %218 = vmatprep.subr.bf16.mxu0 0
    %219 = vmatpush1.bf16.msra.mxu0 0
    %220 = vmatprep.subr.bf16.mxu0 0
    %221 = vmatpush1.bf16.msra.mxu0 0
    %222 = vmatprep.subr.bf16.mxu0 0
    %223 = vmatpush1.bf16.msra.mxu0 0
    %224 = vmatprep.subr.bf16.mxu0 0
    %225 = vmatpush1.bf16.msra.mxu0 0
    %226 = vmatprep.subr.bf16.mxu0 0
    %227 = vmatpush1.bf16.msra.mxu0 0
    %228 = vmatprep.subr.bf16.mxu0 0
    %229 = vmatpush1.bf16.msra.mxu0 0
    %230 = vmatprep.subr.bf16.mxu0 0
    %231 = vmatpush1.bf16.msra.mxu0 0
    %232 = vmatprep.subr.bf16.mxu0 0
    %233 = vmatpush1.bf16.msra.mxu0 0
    %234 = vmatprep.subr.bf16.mxu0 0
    %235 = vmatpush1.bf16.msra.mxu0 0
    %236 = vmatprep.mubr.bf16.mxu0 0
    %237 = vmatmul.mubr.bf16.gmra.mrb[0].mxu0 %v202
    %v238 = vpop.f32.mrb[0].mxu0
    %v239 = vadd.f32 %v187, %v238
    %v240 = vpop.f32.mrb[0].mxu0
    %v241 = vpop.f32.mrb[0].mxu0
    %v242 = vadd.f32 %v187, %v241
    %v243 = vpop.f32.mrb[0].mxu0
    %244 = vdwg.mxu0
    %v245 = vmax.f32 %v239, -20.0
    %v246 = vmax.f32 %v242, -20.0
    %v247 = vmin.f32 %v245, 2.0
    %v248 = vmin.f32 %v246, 2.0
    %v249 = vmul.f32 %v247, 1.442695
    %v250 = vpow.pop %v249
    %v251 = vmul.f32 %v248, 1.442695
    %v252 = vpow.pop %v251
    %v253 = vld [vmem:[%s1] sm:$0xff]
    %v254 = vld [vmem:[%s1 + $0x8] sm:$0xff]
    %257 = vrot.lane.b32.xlu0 %v253, 8
    %v258 = vpop.permute.xlu0 %257
    %259 = vrot.lane.b32.xlu0 %v254, 8
    %v260 = vpop.permute.xlu0 %259
    %v263 = vmul.f32 %v250, %v258
    %v264 = vmul.f32 %v252, %v260
    %267 = vrot.lane.b32.xlu0 %v263, 120
    %v268 = vpop.permute.xlu0 %267
    %269 = vrot.lane.b32.xlu0 %v264, 120
    %v270 = vpop.permute.xlu0 %269
    %v273 = vadd.f32 %v239, %v268
    %v274 = vadd.f32 %v242, %v270
    %v275 = vtanh.pop %v273
    %v276 = vtanh.pop %v274
    %v277 = vld [vmem:[%s8] sm:$0x1]
    %v279 = vlaneseq
    %v280 = vshrl.u32 %v279, 7
    %v281 = vsub.s32 0, %v280
    %v282 = vrot.slane %v277, %v281
    %v284 = vmul.f32 %v282, %v275
    %v285 = vmul.f32 %v282, %v276
    %v286 = vld [vmem:[%s9] sm:$0x1]
    %v288 = vlaneseq
    %v289 = vshrl.u32 %v288, 7
    %v290 = vsub.s32 0, %v289
    %v291 = vrot.slane %v286, %v290
    %v293 = vadd.f32 %v284, %v291
    %v294 = vadd.f32 %v285, %v291
    %v295 = vmul.f32 %v273, -2.0
    %v296 = vmul.f32 %v274, -2.0
    %v297 = vmax.f32 %v295, 0.0
    %v298 = vmax.f32 %v296, 0.0
    %v299 = vand.u32 2147483647, %v295
    %v300 = vand.u32 2147483647, %v296
    %v301 = vsub.f32 0.0, %v299
    %v302 = vsub.f32 0.0, %v300
    %v303 = vmul.f32 %v301, 1.442695
    %v304 = vpow.pop %v303
    %v305 = vmul.f32 %v302, 1.442695
    %v306 = vpow.pop %v305
    %v307 = vadd.f32 %v304, 1.0
    %v308 = vlog2.pop %v307
    %v309 = vmul.f32 %v308, 0.6931472
    %v310 = vmul.f32 -0.5, %v304
    %v311 = vadd.f32 %v310, 1.0
    %v312 = vmul.f32 %v311, %v304
    %v313 = vand.u32 2147483647, %v304
    %vm314 = vcmp.lt.f32.partialorder %v313, 0.0004427343
    %v315 = vsel %vm314, %v312, %v309
    %v316 = vadd.f32 %v306, 1.0
    %v317 = vlog2.pop %v316
    %v318 = vmul.f32 %v317, 0.6931472
    %v319 = vmul.f32 -0.5, %v306
    %v320 = vadd.f32 %v319, 1.0
    %v321 = vmul.f32 %v320, %v306
    %v322 = vand.u32 2147483647, %v306
    %vm323 = vcmp.lt.f32.partialorder %v322, 0.0004427343
    %v324 = vsel %vm323, %v321, %v318
    %v325 = vadd.f32 %v297, %v315
    %v326 = vadd.f32 %v298, %v324
    %v327 = vmul.f32 %v253, -0.5
    %v328 = vmul.f32 %v254, -0.5
    %v329 = vmul.f32 %v327, %v253
    %v330 = vmul.f32 %v328, %v254
    %333 = vrot.lane.b32.xlu0 %v247, 120
    %v334 = vpop.permute.xlu0 %333
    %335 = vrot.lane.b32.xlu0 %v248, 120
    %v336 = vpop.permute.xlu0 %335
    %v339 = vsub.f32 %v329, %v334
    %v340 = vsub.f32 %v330, %v336
    %v341 = vmul.f32 %v273, 2.0
    %v342 = vmul.f32 %v274, 2.0
    %v343 = vadd.f32 %v339, %v341
    %v344 = vadd.f32 %v340, %v342
    %v345 = vmul.f32 %v325, 2.0
    %v346 = vmul.f32 %v326, 2.0
    %v347 = vadd.f32 %v343, %v345
    %v348 = vadd.f32 %v344, %v346
    %vm349 = vcmask 64512
    %v350 = vsel %vm349, %v347, 0.0
    %351 = vadd.xlane.f32.xlu0 %v350
    %v352 = vpop.xlane.xlu0 %351
    %v353 = vsel %vm349, %v348, 0.0
    %354 = vadd.xlane.f32.xlu0 %v353
    %v355 = vpop.xlane.xlu0 %354
    %v356 = vadd.f32 %v352, -18.441864
    %v357 = vadd.f32 %v355, -18.441864
    %v358 = vsel %vm349, %v293, %v356
    %v359 = vsel %vm349, %v294, %v357
    %vm360 = vcmask 72704
    %361 = vst.msk [vmem:[#allocation2] sm:$0xff] %vm360, %v358
    %362 = vst.msk [vmem:[#allocation2 + $0x8] sm:$0xff] %vm360, %v359
    // Predicated region
    $region42: #{tpu_custom_call.1} parent=1 // pred_check
      _
    $region43: #{tpu_custom_call.1} parent=1 // pred_check_branch
      %364 = sbr.rel (0) target = $region45
    $region44: #{tpu_custom_call.1} parent=1 // pred_region
      %s366 = ssub.s32 256, 256
      %367 = vsyncadd [#allocation3], %s366
      %s368 = sshll.u32 [#allocation2], 4
      %s369 = int_to_ptr.vmem [resolvable:$true] %s368
      %374 = dma.vmem_to_hbm [thread:$0]  %s369, 256, %s10, [#allocation3], 128, 128, 8
    $region45: #{tpu_custom_call.1} parent=1 // pred_fallthru
      _
    // Predicated region
    $region46: #{tpu_custom_call.1} parent=1 // pred_check
      _
    $region47: #{tpu_custom_call.1} parent=1 // pred_check_branch
      %376 = sbr.rel (0) target = $region49
    $region48: #{tpu_custom_call.1} parent=1 // pred_region
      %377 = dma.done [#allocation3], 256
    $region49: #{tpu_custom_call.1} parent=1 // pred_fallthru
      _
    %378 = vsyncpa [#allocation3], 1

</llo_original>
